<compile_context>
chip_gen: v6e
topology: v6e:2x2x1
jax: 0.10.0
libtpu: 0.0.40
codegen_flags: <defaults>
</compile_context>

<pallas_src>
import jax
import jax.numpy as jnp
from jax.experimental import pallas as pl
from jax.experimental.pallas import tpu as pltpu

# PyTorch: `while (x == 0).any() and i < 20`.  Rounds after convergence are no-ops
# (where(x==0, out, x) changes nothing), so a fixed 20-round loop is exactly equivalent.
_NUM_INTERP_ITERS = 20


# ----------------------------------------------------------------------------------
# Stage 1: iterative mean-passing imputation (lane-dense (N, T*F) layout)
# ----------------------------------------------------------------------------------
def _interp_kernel(x2_ref, mask_ref, adjt_ref, out_ref):
    """x2_ref: (N, T*F); mask_ref: (N, 1); adjt_ref: (N, N) with adjt[dst, src]=1."""
    adjt = adjt_ref[...]
    xm = jnp.where(mask_ref[...] > 0.5, x2_ref[...], 0.0)          # masked_input

    def one_round(_, xc):
        # A node is an "active" source iff it currently has ANY non-zero entry.
        nonzero = jnp.sum((xc != 0.0).astype(jnp.float32), axis=1, keepdims=True)   # (N, 1)
        active = (nonzero > 0.0).astype(jnp.float32)                                # (N, 1)
        # Inactive sources are exactly all-zero, so the unfiltered numerator equals the
        # filtered one; only the mean divisor needs the source filtering.
        agg = jnp.dot(adjt, xc, preferred_element_type=jnp.float32)                 # (N, T*F)
        deg = jnp.dot(adjt, active, preferred_element_type=jnp.float32)             # (N, 1)
        inv_deg = jnp.where(deg > 0.0, 1.0 / deg, 0.0)               # no incoming edges -> 0
        mean_msg = agg * inv_deg
        return jnp.where(xc == 0.0, mean_msg, xc)

    out_ref[...] = jax.lax.fori_loop(0, _NUM_INTERP_ITERS, one_round, xm)


# ----------------------------------------------------------------------------------
# Stage 2: single-layer LSTM (input = hidden = F), streamed over time via the grid
# ----------------------------------------------------------------------------------
def _lstm_kernel(x_ref, wih_ref, whh_ref, b_ref, out_ref, h_ref, c_ref):
    """x_ref/out_ref: (TB, N, F) time block; wih_ref: (F, 4H); whh_ref: (H, 4H);
    b_ref: (1, 4H) = b_ih + b_hh; h_ref/c_ref: (N, H) VMEM scratch carried across steps."""
    @pl.when(pl.program_id(0) == 0)
    def _init():
        h_ref[...] = jnp.zeros_like(h_ref)
        c_ref[...] = jnp.zeros_like(c_ref)

    tb = x_ref.shape[0]
    hdim = whh_ref.shape[0]
    wih = wih_ref[...]
    whh = whh_ref[...]
    bias = b_ref[...]

    for t in range(tb):                                   # tb is a small static constant
        gates = (jnp.dot(x_ref[t], wih, preferred_element_type=jnp.float32)
                 + jnp.dot(h_ref[...], whh, preferred_element_type=jnp.float32)
                 + bias)                                  # (N, 4H), PyTorch gate order i,f,g,o
        i_g = jax.nn.sigmoid(gates[:, 0 * hdim:1 * hdim])
        f_g = jax.nn.sigmoid(gates[:, 1 * hdim:2 * hdim])
        g_g = jnp.tanh(gates[:, 2 * hdim:3 * hdim])
        o_g = jax.nn.sigmoid(gates[:, 3 * hdim:4 * hdim])
        c_new = f_g * c_ref[...] + i_g * g_g
        h_new = o_g * jnp.tanh(c_new)
        c_ref[...] = c_new
        h_ref[...] = h_new
        out_ref[t] = h_new


# ----------------------------------------------------------------------------------
# Wrapper
# ----------------------------------------------------------------------------------
def interpolation_lstm_pallas(x, mask, adj, w_ih, w_hh, b_ih, b_hh, *, time_block=None):
    """x: (T, N, F) f32; mask: (N,) bool; adj: (N, N) with adj[src, dst]=1 (to_dense_adj layout);
    LSTM params in PyTorch layout: w_ih (4H, F), w_hh (4H, H), b_ih/b_hh (4H,), H == F."""
    T, N, F = x.shape
    H = w_hh.shape[1]
    assert w_ih.shape == (4 * H, F) and w_hh.shape == (4 * H, H)

    vmem = pl.BlockSpec(memory_space=pltpu.MemorySpace.VMEM)

    # ---- Stage 1: imputation on the lane-dense (N, T*F) layout ----
    # TODO(synk): for very large T*N*F the imputation would need an HBM-resident x with a
    # manually pipelined per-round matmul (the fixed-point loop couples all timesteps through
    # the per-node activity mask); at typical graph-imputation sizes it fits VMEM comfortably.
    x2 = jnp.transpose(x, (1, 0, 2)).reshape(N, T * F)
    maskf = mask.astype(jnp.float32).reshape(N, 1)
    adjt = jnp.transpose(adj)                                    # adjt[dst, src]

    interp_cost = pl.CostEstimate(
        flops=_NUM_INTERP_ITERS * (2 * N * N * (T * F + 1) + 4 * N * T * F),
        transcendentals=0,
        bytes_accessed=4 * (2 * N * T * F + N * N + N))

    interp2 = pl.pallas_call(
        _interp_kernel,
        out_shape=jax.ShapeDtypeStruct((N, T * F), jnp.float32),
        in_specs=[vmem, vmem, vmem],
        out_specs=vmem,
        compiler_params=pltpu.CompilerParams(vmem_limit_bytes=32 * 1024 * 1024),
        cost_estimate=interp_cost,
    )(x2, maskf, adjt)

    interp_x = jnp.transpose(interp2.reshape(N, T, F), (1, 0, 2))   # back to (T, N, F)

    # ---- Stage 2: LSTM streamed over time ----
    if time_block is None:
        time_block = T if T <= 8 else 8
    assert T % time_block == 0, "time_block must divide T"
    grid = (T // time_block,)

    wih_t = jnp.transpose(w_ih)                 # (F, 4H)  pre-transposed once
    whh_t = jnp.transpose(w_hh)                 # (H, 4H)
    bias = (b_ih + b_hh).reshape(1, 4 * H)      # fold both biases

    lstm_cost = pl.CostEstimate(
        flops=T * (2 * N * F * 4 * H + 2 * N * H * 4 * H + 10 * N * H),
        transcendentals=T * 5 * N * H,
        bytes_accessed=4 * (T * N * F + T * N * H + F * 4 * H + H * 4 * H + 4 * H))

    out = pl.pallas_call(
        _lstm_kernel,
        out_shape=jax.ShapeDtypeStruct((T, N, H), jnp.float32),
        grid=grid,
        in_specs=[
            pl.BlockSpec((time_block, N, F), lambda t: (t, 0, 0)),
            pl.BlockSpec((F, 4 * H), lambda t: (0, 0)),
            pl.BlockSpec((H, 4 * H), lambda t: (0, 0)),
            pl.BlockSpec((1, 4 * H), lambda t: (0, 0)),
        ],
        out_specs=pl.BlockSpec((time_block, N, H), lambda t: (t, 0, 0)),
        scratch_shapes=[pltpu.VMEM((N, H), jnp.float32),
                        pltpu.VMEM((N, H), jnp.float32)],
        compiler_params=pltpu.CompilerParams(
            dimension_semantics=("arbitrary",),
            vmem_limit_bytes=32 * 1024 * 1024),
        cost_estimate=lstm_cost,
    )(interp_x, wih_t, whh_t, bias)

    return out


# ----------------------------------------------------------------------------------
# Pure-JAX reference (mirrors the PyTorch forward)
# ----------------------------------------------------------------------------------
def interpolation_lstm_reference(x, mask, adj, w_ih, w_hh, b_ih, b_hh):
    T, N, F = x.shape
    H = w_hh.shape[1]
    xc = jnp.where(mask[None, :, None], x, 0.0)                      # masked_input

    for _ in range(_NUM_INTERP_ITERS):
        active = (jnp.sum(xc != 0.0, axis=(0, 2)) > 0)               # per-source activity
        A = adj * active[:, None].astype(adj.dtype)                  # zero rows of inactive sources
        deg = jnp.sum(A, axis=0)                                     # incoming degree per dst
        num = jnp.einsum('sd,tsf->tdf', A, xc)
        mean_msg = jnp.where(deg[None, :, None] > 0,
                             num / jnp.where(deg == 0, 1.0, deg)[None, :, None],
                             0.0)
        xc = jnp.where(xc == 0.0, mean_msg, xc)

    h = jnp.zeros((N, H), jnp.float32)
    c = jnp.zeros((N, H), jnp.float32)
    outs = []
    for t in range(T):
        g = xc[t] @ w_ih.T + h @ w_hh.T + b_ih + b_hh
        i_g = jax.nn.sigmoid(g[:, 0:H])
        f_g = jax.nn.sigmoid(g[:, H:2 * H])
        g_g = jnp.tanh(g[:, 2 * H:3 * H])
        o_g = jax.nn.sigmoid(g[:, 3 * H:4 * H])
        c = f_g * c + i_g * g_g
        h = o_g * jnp.tanh(c)
        outs.append(h)
    return jnp.stack(outs, axis=0)


if __name__ == "__main__":
    T, N, F = 8, 16, 4        # seq len, nodes, features (LSTM hidden == features)
    H = F

    key = jax.random.PRNGKey(0)
    kx, km, kw = jax.random.split(key, 3)

    x = jax.random.normal(kx, (T, N, F), jnp.float32)
    mask = jax.random.bernoulli(km, 0.6, (N,))                      # observed-node mask

    # bidirectional ring graph; dense adjacency adj[src, dst] = 1 (to_dense_adj layout)
    src = jnp.arange(N)
    dst = (src + 1) % N
    ei_src = jnp.concatenate([src, dst])
    ei_dst = jnp.concatenate([dst, src])
    adj = jnp.zeros((N, N), jnp.float32).at[ei_src, ei_dst].set(1.0)
    # NOTE: edge_weight / labels / data args are unused by the PyTorch forward, so omitted.

    ks = jax.random.split(kw, 4)
    s = 1.0 / jnp.sqrt(jnp.float32(H))
    w_ih = jax.random.uniform(ks[0], (4 * H, F), jnp.float32, -s, s)
    w_hh = jax.random.uniform(ks[1], (4 * H, H), jnp.float32, -s, s)
    b_ih = jax.random.uniform(ks[2], (4 * H,), jnp.float32, -s, s)
    b_hh = jax.random.uniform(ks[3], (4 * H,), jnp.float32, -s, s)

    out = interpolation_lstm_pallas(x, mask, adj, w_ih, w_hh, b_ih, b_hh, time_block=4)
    out = jax.block_until_ready(out)

    ref = interpolation_lstm_reference(x, mask, adj, w_ih, w_hh, b_ih, b_hh)
    assert out.shape == (T, N, F)
    assert bool(jnp.all(jnp.isfinite(out)))
    assert jnp.allclose(out, ref, atol=1e-4, rtol=1e-4), (
        f"max abs diff {jnp.max(jnp.abs(out - ref))}")

    print("KERNEL_OK")
</pallas_src>

<mosaic_0001>
module attributes {stable_mosaic.version = 11 : i64} {
  func.func @_interp_kernel(%arg0: memref<16x32xf32, #tpu.memory_space<vmem>>, %arg1: memref<16x1xf32, #tpu.memory_space<vmem>>, %arg2: memref<16x16xf32, #tpu.memory_space<vmem>>, %arg3: memref<16x32xf32, #tpu.memory_space<vmem>>) attributes {dimension_semantics = [], scalar_prefetch = 0 : i64, scratch_operands = 0 : i64, tpu.core_type = #tpu.core_type<tc>} {
    %c0 = arith.constant 0 : index
    %c0_0 = arith.constant 0 : index
    %0 = vector.load %arg2[%c0, %c0_0] : memref<16x16xf32, #tpu.memory_space<vmem>>, vector<16x16xf32>
    %c0_1 = arith.constant 0 : index
    %c0_2 = arith.constant 0 : index
    %1 = vector.load %arg1[%c0_1, %c0_2] : memref<16x1xf32, #tpu.memory_space<vmem>>, vector<16x1xf32>
    %cst = arith.constant 5.000000e-01 : f32
    %2 = vector.broadcast %cst : f32 to vector<16x1xf32>
    %3 = arith.cmpf ogt, %1, %2 : vector<16x1xf32>
    %c0_3 = arith.constant 0 : index
    %c0_4 = arith.constant 0 : index
    %4 = vector.load %arg0[%c0_3, %c0_4] : memref<16x32xf32, #tpu.memory_space<vmem>>, vector<16x32xf32>
    %cst_5 = arith.constant 0.000000e+00 : f32
    %5 = vector.shape_cast %3 : vector<16x1xi1> to vector<16x1xi1>
    %6 = vector.broadcast %5 : vector<16x1xi1> to vector<16x32xi1>
    %7 = vector.broadcast %cst_5 : f32 to vector<16x32xf32>
    %8 = arith.select %6, %4, %7 : vector<16x32xi1>, vector<16x32xf32>
    %c0_i32 = arith.constant 0 : i32
    %c20_i32 = arith.constant 20 : i32
    %9 = arith.addi %c0_i32, %c20_i32 : i32
    %c1_i32 = arith.constant 1 : i32
    %10 = scf.for %arg4 = %c0_i32 to %9 step %c1_i32 iter_args(%arg5 = %8) -> (vector<16x32xf32>)  : i32 {
      %cst_8 = arith.constant 0.000000e+00 : f32
      %12 = vector.broadcast %cst_8 : f32 to vector<16x32xf32>
      %13 = arith.cmpf one, %arg5, %12 : vector<16x32xf32>
      %14 = arith.extui %13 : vector<16x32xi1> to vector<16x32xi32>
      %15 = arith.sitofp %14 : vector<16x32xi32> to vector<16x32xf32>
      %cst_9 = arith.constant dense<0.000000e+00> : vector<16xf32>
      %16 = vector.multi_reduction <add>, %15, %cst_9 [1] : vector<16x32xf32> to vector<16xf32>
      %17 = vector.shape_cast %16 : vector<16xf32> to vector<16x1xf32>
      %cst_10 = arith.constant 0.000000e+00 : f32
      %18 = vector.broadcast %cst_10 : f32 to vector<16x1xf32>
      %19 = arith.cmpf ogt, %17, %18 : vector<16x1xf32>
      %20 = arith.extui %19 : vector<16x1xi1> to vector<16x1xi32>
      %21 = arith.sitofp %20 : vector<16x1xi32> to vector<16x1xf32>
      %cst_11 = arith.constant dense<0.000000e+00> : vector<16x32xf32>
      %22 = tpu.matmul %0, %arg5, %cst_11 {dimension_numbers = #tpu.dot_dimension_numbers<[1], [0], [0], [1], [0, 0, 1, 1], [], []>} : vector<16x16xf32>, vector<16x32xf32>, vector<16x32xf32> -> vector<16x32xf32>
      %cst_12 = arith.constant dense<0.000000e+00> : vector<16x1xf32>
      %23 = tpu.matmul %0, %21, %cst_12 {dimension_numbers = #tpu.dot_dimension_numbers<[1], [0], [0], [1], [0, 0, 1, 1], [], []>} : vector<16x16xf32>, vector<16x1xf32>, vector<16x1xf32> -> vector<16x1xf32>
      %cst_13 = arith.constant 0.000000e+00 : f32
      %24 = vector.broadcast %cst_13 : f32 to vector<16x1xf32>
      %25 = arith.cmpf ogt, %23, %24 : vector<16x1xf32>
      %cst_14 = arith.constant 1.000000e+00 : f32
      %26 = vector.broadcast %cst_14 : f32 to vector<16x1xf32>
      %27 = arith.divf %26, %23 : vector<16x1xf32>
      %cst_15 = arith.constant 0.000000e+00 : f32
      %28 = vector.broadcast %cst_15 : f32 to vector<16x1xf32>
      %29 = arith.select %25, %27, %28 : vector<16x1xi1>, vector<16x1xf32>
      %30 = vector.broadcast %29 : vector<16x1xf32> to vector<16x32xf32>
      %31 = arith.mulf %22, %30 : vector<16x32xf32>
      %cst_16 = arith.constant 0.000000e+00 : f32
      %32 = vector.broadcast %cst_16 : f32 to vector<16x32xf32>
      %33 = arith.cmpf oeq, %arg5, %32 : vector<16x32xf32>
      %34 = arith.select %33, %31, %arg5 : vector<16x32xi1>, vector<16x32xf32>
      scf.yield %34 : vector<16x32xf32>
    }
    %c0_6 = arith.constant 0 : index
    %c0_7 = arith.constant 0 : index
    %11 = vector.load %arg3[%c0_6, %c0_7] : memref<16x32xf32, #tpu.memory_space<vmem>>, vector<16x32xf32>
    tpu.vector_store %arg3[%c0_6, %c0_7], %10 {strides = array<i32>} : memref<16x32xf32, #tpu.memory_space<vmem>>, vector<16x32xf32>,
    return
  }
}

</mosaic_0001>

<llo_original>
// kernel: tpu_custom_call.1
$region0: #{tpu_custom_call.1}
  #allocation0 [shape = 'u32[]', space=smem, size = 0x4, offset = 0x4, fixed_abs, tag = 'smem constant byte address 0x4 - core index']
  #allocation1 [shape = 'u32[144,128]{1,0:T(1,128)}', space=vmem, size = 0x12000, scoped, tag = 'internal scratch']
  %s0 = inlined_call_operand.vmem [shape: f32[16,32], index: 0, kind: input, shape index: {}]
  %s1 = inlined_call_operand.vmem [shape: f32[16,1], index: 1, kind: input, shape index: {}]
  %s2 = inlined_call_operand.hbm [shape: f32[16,16], index: 2, kind: input, shape index: {}]
  %s3 = inlined_call_operand.hbm [shape: f32[16,32], index: 3, kind: output, shape index: {}]
  %s4 = sld [smem:[#allocation0]]
  $region33: #{tpu_custom_call.1} parent=0
    _
  %s6 = ssub.s32 1, %s4
  %s7 = scalar_select 0, %s6, %s4
  $region1: #{tpu_custom_call.1} parent=0
    #allocation2 [shape = 'u8[8192]{0}', space=vmem, size = 0x2000, scoped, tag = 'input window, operand 2, single buffered']
    #allocation3 [shape = 's32[1]{0}', space=sflag, size = 0x4, scoped, tag = 'scoped memory for tpu_custom_call.1']
    #allocation4 [shape = 's32[1]{0}', space=sflag, size = 0x4, scoped, tag = 'scoped memory for tpu_custom_call.1']
    #allocation5 [shape = 'u8[8192]{0}', space=vmem, size = 0x2000, scoped, tag = 'output window, operand 0, single buffered']
    %8 = vsyncpa [#allocation3], 0
    %9 = vsyncpa [#allocation4], 0
    // Predicated region
    $region2: #{tpu_custom_call.1} parent=1 // pred_check
      _
    $region3: #{tpu_custom_call.1} parent=1 // pred_check_branch
      %11 = sbr.rel (0) target = $region5
    $region4: #{tpu_custom_call.1} parent=1 // pred_region
      _
    $region5: #{tpu_custom_call.1} parent=1 // pred_fallthru
      _
    // Predicated region
    $region6: #{tpu_custom_call.1} parent=1 // pred_check
      _
    $region7: #{tpu_custom_call.1} parent=1 // pred_check_branch
      %13 = sbr.rel (0) target = $region9
    $region8: #{tpu_custom_call.1} parent=1 // pred_region
      _
    $region9: #{tpu_custom_call.1} parent=1 // pred_fallthru
      _
    // Predicated region
    $region10: #{tpu_custom_call.1} parent=1 // pred_check
      _
    $region11: #{tpu_custom_call.1} parent=1 // pred_check_branch
      %15 = sbr.rel (0) target = $region13
    $region12: #{tpu_custom_call.1} parent=1 // pred_region
      %s17 = ssub.s32 256, 256
      %18 = vsyncadd [#allocation3], %s17
      %s19 = sshll.u32 [#allocation2], 4
      %s20 = int_to_ptr.vmem [resolvable:$true] %s19
      %25 = dma.hbm_to_vmem [thread:$0]  %s2, 256, %s20, [#allocation3], 128, 128, 8
    $region13: #{tpu_custom_call.1} parent=1 // pred_fallthru
      _
    // Predicated region
    $region14: #{tpu_custom_call.1} parent=1 // pred_check
      _
    $region15: #{tpu_custom_call.1} parent=1 // pred_check_branch
      %27 = sbr.rel (0) target = $region17
    $region16: #{tpu_custom_call.1} parent=1 // pred_region
      %28 = dma.done [#allocation3], 256
    $region17: #{tpu_custom_call.1} parent=1 // pred_fallthru
      _
    %v29 = vld [vmem:[#allocation2] sm:$0xff]
    %v30 = vld [vmem:[#allocation2 + $0x8] sm:$0xff]
    %v31 = vld [vmem:[%s1] sm:$0xff]
    %v32 = vld [vmem:[%s1 + $0x8] sm:$0xff]
    %vm33 = vcmp.gt.f32.partialorder %v31, 0.5
    %vm34 = vcmp.gt.f32.partialorder %v32, 0.5
    %v35 = vld [vmem:[%s0] sm:$0xff]
    %v36 = vld [vmem:[%s0 + $0x8] sm:$0xff]
    %v37 = vsel %vm33, 1, 0
    %v38 = vsel %vm34, 1, 0
    %39 = vset.pattern.permute.xlu0 0
    %40 = vperm.xlu0 %39, %v37
    %v41 = vpop.permute.xlu0 %40
    %42 = vset.pattern.permute.xlu0 0
    %43 = vperm.xlu0 %42, %v38
    %v44 = vpop.permute.xlu0 %43
    %vm45 = vcmp.eq.s32.totalorder %v41, 1
    %vm46 = vcmp.eq.s32.totalorder %v44, 1
    %v47 = vsel %vm45, %v35, 0.0
    %v48 = vsel %vm46, %v36, 0.0
    loop: start=0, step=1, limit=20
    $region18: #{tpu_custom_call.1} parent=1 // loop_pre_header
      _
    $region19: #{tpu_custom_call.1} parent=1 // loop_header
      %s50 = sphi 0, %s54
      %p51 = scmp.ge.s32.totalorder %s50, 20
      %v55 = vphi %v47, %v255
      %v56 = vphi %v48, %v256
    $region20: #{tpu_custom_call.1} parent=1 // loop_header_branch
      %53 = sbr.rel (%p51) target = $region24
    $region21: #{tpu_custom_call.1} parent=1 // loop_body
      %vm57 = vcmp.ne.f32.partialorder %v55, 0.0
      %vm58 = vcmp.ne.f32.partialorder %v56, 0.0
      %v59 = vsel %vm57, 1, 0
      %v60 = vsel %vm58, 1, 0
      %v61 = vcvt.s32.f32 %v59
      %v62 = vcvt.s32.f32 %v60
      %vm63 = vcmask 261120
      %v64 = vsel %vm63, %v61, 0.0
      %65 = vadd.xlane.f32.xlu0 %v64
      %v66 = vpop.xlane.xlu0 %65
      %v67 = vsel %vm63, %v62, 0.0
      %68 = vadd.xlane.f32.xlu0 %v67
      %v69 = vpop.xlane.xlu0 %68
      %vm70 = vcmp.gt.f32.partialorder %v66, 0.0
      %vm71 = vcmp.gt.f32.partialorder %v69, 0.0
      %v72 = vsel %vm70, 1, 0
      %v73 = vsel %vm71, 1, 0
      %v74 = vcvt.s32.f32 %v72
      %v75 = vcvt.s32.f32 %v73
      %vm76 = vcmask 130048
      %v78 = vsel %vm76, %v29, 0
      %v81 = vsel %vm76, %v30, 0
      %83 = vmatprep.subr.mxu0 0.0
      %84 = vmatpush1.msra.mxu0 0.0
      %85 = vmatprep.subr.mxu0 0.0
      %86 = vmatpush1.msra.mxu0 0.0
      %87 = vmatprep.subr.mxu0 0.0
      %88 = vmatpush1.msra.mxu0 0.0
      %89 = vmatprep.subr.mxu0 0.0
      %90 = vmatpush1.msra.mxu0 0.0
      %91 = vmatprep.subr.mxu0 0.0
      %92 = vmatpush1.msra.mxu0 0.0
      %93 = vmatprep.subr.mxu0 0.0
      %94 = vmatpush1.msra.mxu0 0.0
      %95 = vmatprep.subr.mxu0 0.0
      %96 = vmatpush1.msra.mxu0 0.0
      %97 = vmatprep.subr.mxu0 0.0
      %98 = vmatpush1.msra.mxu0 0.0
      %99 = vmatprep.subr.mxu0 0.0
      %100 = vmatpush1.msra.mxu0 0.0
      %101 = vmatprep.subr.mxu0 0.0
      %102 = vmatpush1.msra.mxu0 0.0
      %103 = vmatprep.subr.mxu0 0.0
      %104 = vmatpush1.msra.mxu0 0.0
      %105 = vmatprep.subr.mxu0 0.0
      %106 = vmatpush1.msra.mxu0 0.0
      %107 = vmatprep.subr.mxu0 0.0
      %108 = vmatpush1.msra.mxu0 0.0
      %109 = vmatprep.subr.mxu0 0.0
      %110 = vmatpush1.msra.mxu0 0.0
      %111 = vmatprep.subr.mxu0 0.0
      %112 = vmatpush1.msra.mxu0 %v56
      %113 = vmatprep.subr.mxu0 0.0
      %114 = vmatpush1.msra.mxu0 %v55
      %115 = vmatprep.subr.mxu0 0.0
      %116 = vmatpush2.msra.mxu0 0.0
      %117 = vmatprep.subr.mxu0 0.0
      %118 = vmatpush2.msra.mxu0 0.0
      %119 = vmatprep.subr.mxu0 0.0
      %120 = vmatpush2.msra.mxu0 0.0
      %121 = vmatprep.subr.mxu0 0.0
      %122 = vmatpush2.msra.mxu0 0.0
      %123 = vmatprep.subr.mxu0 0.0
      %124 = vmatpush2.msra.mxu0 0.0
      %125 = vmatprep.subr.mxu0 0.0
      %126 = vmatpush2.msra.mxu0 0.0
      %127 = vmatprep.subr.mxu0 0.0
      %128 = vmatpush2.msra.mxu0 0.0
      %129 = vmatprep.subr.mxu0 0.0
      %130 = vmatpush2.msra.mxu0 0.0
      %131 = vmatprep.subr.mxu0 0.0
      %132 = vmatpush2.msra.mxu0 0.0
      %133 = vmatprep.subr.mxu0 0.0
      %134 = vmatpush2.msra.mxu0 0.0
      %135 = vmatprep.subr.mxu0 0.0
      %136 = vmatpush2.msra.mxu0 0.0
      %137 = vmatprep.subr.mxu0 0.0
      %138 = vmatpush2.msra.mxu0 0.0
      %139 = vmatprep.subr.mxu0 0.0
      %140 = vmatpush2.msra.mxu0 0.0
      %141 = vmatprep.subr.mxu0 0.0
      %142 = vmatpush2.msra.mxu0 0.0
      %143 = vmatprep.subr.mxu0 0.0
      %144 = vmatpush2.msra.mxu0 0.0
      %145 = vmatprep.subr.mxu0 0.0
      %146 = vmatpush2.msra.mxu0 0.0
      %147 = vmatprep.mubr.f32.mxu0 0.0
      %148 = vmatmul.mubr.f32.gmra.mxu0 %v78
      %v149 = vpop.f32.mrf.mxu0
      %v150 = vadd.f32 0.0, %v149
      %v151 = vpop.f32.mrf.mxu0
      %152 = vmatprep.mubr.f32.mxu0 0.0
      %153 = vmatmul.mubr.f32.gmra.mxu0 %v81
      %v154 = vpop.f32.mrf.mxu0
      %v155 = vadd.f32 0.0, %v154
      %v156 = vpop.f32.mrf.mxu0
      %157 = vdwg.mxu0
      %158 = vmatprep.subr.mxu0 0.0
      %159 = vmatpush1.msra.mxu0 0.0
      %160 = vmatprep.subr.mxu0 0.0
      %161 = vmatpush1.msra.mxu0 0.0
      %162 = vmatprep.subr.mxu0 0.0
      %163 = vmatpush1.msra.mxu0 0.0
      %164 = vmatprep.subr.mxu0 0.0
      %165 = vmatpush1.msra.mxu0 0.0
      %166 = vmatprep.subr.mxu0 0.0
      %167 = vmatpush1.msra.mxu0 0.0
      %168 = vmatprep.subr.mxu0 0.0
      %169 = vmatpush1.msra.mxu0 0.0
      %170 = vmatprep.subr.mxu0 0.0
      %171 = vmatpush1.msra.mxu0 0.0
      %172 = vmatprep.subr.mxu0 0.0
      %173 = vmatpush1.msra.mxu0 0.0
      %174 = vmatprep.subr.mxu0 0.0
      %175 = vmatpush1.msra.mxu0 0.0
      %176 = vmatprep.subr.mxu0 0.0
      %177 = vmatpush1.msra.mxu0 0.0
      %178 = vmatprep.subr.mxu0 0.0
      %179 = vmatpush1.msra.mxu0 0.0
      %180 = vmatprep.subr.mxu0 0.0
      %181 = vmatpush1.msra.mxu0 0.0
      %182 = vmatprep.subr.mxu0 0.0
      %183 = vmatpush1.msra.mxu0 0.0
      %184 = vmatprep.subr.mxu0 0.0
      %185 = vmatpush1.msra.mxu0 0.0
      %186 = vmatprep.subr.mxu0 0.0
      %187 = vmatpush1.msra.mxu0 %v75
      %188 = vmatprep.subr.mxu0 0.0
      %189 = vmatpush1.msra.mxu0 %v74
      %190 = vmatprep.subr.mxu0 0.0
      %191 = vmatpush2.msra.mxu0 0.0
      %192 = vmatprep.subr.mxu0 0.0
      %193 = vmatpush2.msra.mxu0 0.0
      %194 = vmatprep.subr.mxu0 0.0
      %195 = vmatpush2.msra.mxu0 0.0
      %196 = vmatprep.subr.mxu0 0.0
      %197 = vmatpush2.msra.mxu0 0.0
      %198 = vmatprep.subr.mxu0 0.0
      %199 = vmatpush2.msra.mxu0 0.0
      %200 = vmatprep.subr.mxu0 0.0
      %201 = vmatpush2.msra.mxu0 0.0
      %202 = vmatprep.subr.mxu0 0.0
      %203 = vmatpush2.msra.mxu0 0.0
      %204 = vmatprep.subr.mxu0 0.0
      %205 = vmatpush2.msra.mxu0 0.0
      %206 = vmatprep.subr.mxu0 0.0
      %207 = vmatpush2.msra.mxu0 0.0
      %208 = vmatprep.subr.mxu0 0.0
      %209 = vmatpush2.msra.mxu0 0.0
      %210 = vmatprep.subr.mxu0 0.0
      %211 = vmatpush2.msra.mxu0 0.0
      %212 = vmatprep.subr.mxu0 0.0
      %213 = vmatpush2.msra.mxu0 0.0
      %214 = vmatprep.subr.mxu0 0.0
      %215 = vmatpush2.msra.mxu0 0.0
      %216 = vmatprep.subr.mxu0 0.0
      %217 = vmatpush2.msra.mxu0 0.0
      %218 = vmatprep.subr.mxu0 0.0
      %219 = vmatpush2.msra.mxu0 0.0
      %220 = vmatprep.subr.mxu0 0.0
      %221 = vmatpush2.msra.mxu0 0.0
      %222 = vmatprep.mubr.f32.mxu0 0.0
      %223 = vmatmul.mubr.f32.gmra.mxu0 %v78
      %v224 = vpop.f32.mrf.mxu0
      %v225 = vadd.f32 0.0, %v224
      %v226 = vpop.f32.mrf.mxu0
      %227 = vmatprep.mubr.f32.mxu0 0.0
      %228 = vmatmul.mubr.f32.gmra.mxu0 %v81
      %v229 = vpop.f32.mrf.mxu0
      %v230 = vadd.f32 0.0, %v229
      %v231 = vpop.f32.mrf.mxu0
      %232 = vdwg.mxu0
      %vm233 = vcmp.gt.f32.partialorder %v225, 0.0
      %vm234 = vcmp.gt.f32.partialorder %v230, 0.0
      %v235 = vrcp.pop %v225
      %v236 = vmul.f32 1.0, %v235
      %v237 = vrcp.pop %v230
      %v238 = vmul.f32 1.0, %v237
      %v239 = vsel %vm233, %v236, 0.0
      %v240 = vsel %vm234, %v238, 0.0
      %242 = vset.pattern.permute.xlu0 0
      %243 = vperm.xlu0 %242, %v239
      %v244 = vpop.permute.xlu0 %243
      %247 = vset.pattern.permute.xlu0 0
      %248 = vperm.xlu0 %247, %v240
      %v249 = vpop.permute.xlu0 %248
      %v251 = vmul.f32 %v150, %v244
      %v252 = vmul.f32 %v155, %v249
      %vm253 = vcmp.eq.f32.partialorder %v55, 0.0
      %vm254 = vcmp.eq.f32.partialorder %v56, 0.0
      %v255 = vsel %vm253, %v251, %v55
      %v256 = vsel %vm254, %v252, %v56
    $region22: #{tpu_custom_call.1} parent=1 // loop_footer
      %s54 = sadd.s32 1, %s50
    $region23: #{tpu_custom_call.1} parent=1 // loop_footer_branch
      %49 = sbr.rel target = $region19
    $region24: #{tpu_custom_call.1} parent=1 // loop_exit
      _
    %vm257 = vcmask 261120
    %258 = vst.msk [vmem:[#allocation5] sm:$0xff] %vm257, %v55
    %259 = vst.msk [vmem:[#allocation5 + $0x8] sm:$0xff] %vm257, %v56
    // Predicated region
    $region25: #{tpu_custom_call.1} parent=1 // pred_check
      _
    $region26: #{tpu_custom_call.1} parent=1 // pred_check_branch
      %261 = sbr.rel (0) target = $region28
    $region27: #{tpu_custom_call.1} parent=1 // pred_region
      %s263 = ssub.s32 256, 256
      %264 = vsyncadd [#allocation4], %s263
      %s265 = sshll.u32 [#allocation5], 4
      %s266 = int_to_ptr.vmem [resolvable:$true] %s265
      %271 = dma.vmem_to_hbm [thread:$0]  %s266, 256, %s3, [#allocation4], 128, 128, 8
    $region28: #{tpu_custom_call.1} parent=1 // pred_fallthru
      _
    // Predicated region
    $region29: #{tpu_custom_call.1} parent=1 // pred_check
      _
    $region30: #{tpu_custom_call.1} parent=1 // pred_check_branch
      %273 = sbr.rel (0) target = $region32
    $region31: #{tpu_custom_call.1} parent=1 // pred_region
      %274 = dma.done [#allocation4], 256
    $region32: #{tpu_custom_call.1} parent=1 // pred_fallthru
      _
    %275 = vsyncpa [#allocation3], 1
    %276 = vsyncpa [#allocation4], 1

</llo_original>
